<compile_context>
chip_gen: v7x
topology: tpu7x:2x2x1
jax: 0.10.0
libtpu: 0.0.40
codegen_flags: <defaults>
</compile_context>

<pallas_src>
import functools

import jax
import jax.numpy as jnp
from jax import lax
from jax.experimental import pallas as pl
from jax.experimental.pallas import tpu as pltpu


def _round_up(v, m):
    return -(-v // m) * m


# ---------------------------------------------------------------------------
# Geometry shared by the kernel and the wrapper.
#   wq        : padded-plane width (W + 2)
#   lw        : lane width of every matmul / of the output block (mult. of 128)
#   write_off : lane-aligned slab offset where a stage writes its output
#               (the padded plane then starts at write_off - (wq + 1))
#   l_in      : length of the wrapper-padded input slab (plane starts at 0)
#   l_slab    : length of the inter-stage VMEM scratch slabs
# ---------------------------------------------------------------------------
def _fused_geometry(h, w):
    wq = w + 2
    lw = _round_up(h * wq, 128)
    write_off = _round_up(wq + 1, 128)
    d_max = 2 * wq + 2                       # largest 3x3 tap offset
    l_in = _round_up(lw + d_max, 128)
    l_slab = _round_up(write_off + lw + wq + 2, 128)
    return wq, lw, write_off, l_in, l_slab


def _make_fused_kernel(h, w):
    wq, lw, write_off, _, _ = _fused_geometry(h, w)
    base = write_off - (wq + 1)              # slab offset of padded-plane origin
    d_conv = tuple(ky * wq + kx for ky in range(3) for kx in range(3))
    d_up = tuple(dy * wq + dx for dy in (0, 1) for dx in (0, 1))

    def kernel(x_ref, w1_ref, b1_ref, w2_ref, b2_ref, wt_ref, bt_ref,
               o_ref, pad2_ref, pad3_ref):
        # Mask of "real" output positions in the flat (H, wq) layout; used to
        # restore the zero halo when stashing a stage output into the next
        # stage's padded-plane slab.
        col = lax.broadcasted_iota(jnp.int32, (1, lw), 1)
        interior = (col % wq < w) & (col < h * wq)

        def conv_relu(src, off, w_ref, b_ref):
            # 9 lane-shifted views -> one (9*Cin, lw) slab -> one MXU matmul.
            xk = jnp.concatenate(
                [src[:, off + d: off + d + lw] for d in d_conv], axis=0)
            acc = jnp.dot(w_ref[...], xk, preferred_element_type=jnp.float32)
            return jnp.maximum(acc + b_ref[...], 0.0)          # f32 epilogue

        def stash(dst_ref, y):
            # Zero the slab (halo rows/cols + tail), then drop the masked
            # stage output in at the lane-aligned padded-plane offset.
            dst_ref[...] = jnp.zeros_like(dst_ref)
            dst_ref[:, write_off:write_off + lw] = (
                jnp.where(interior, y, 0.0).astype(dst_ref.dtype))

        # conv1 + BN + ReLU  (reads the wrapper-padded input plane, base 0)
        stash(pad2_ref, conv_relu(x_ref[0], 0, w1_ref, b1_ref))
        # conv2 + BN + ReLU
        stash(pad3_ref, conv_relu(pad2_ref, base, w2_ref, b2_ref))

        # ConvTranspose2d(3x3, s=2, p=1, op=1) + BN + ReLU:
        # all 4 parity phases via ONE matmul against a single 4-tap slab.
        xk = jnp.concatenate(
            [pad3_ref[:, write_off + d: write_off + d + lw] for d in d_up],
            axis=0)                                            # (4*Cmid, lw)
        acc = jnp.dot(wt_ref[...], xk, preferred_element_type=jnp.float32)
        o_ref[0] = jnp.maximum(acc + bt_ref[...], 0.0).astype(o_ref.dtype)

    return kernel


# ---------------------------------------------------------------------------
# Parameter folding (eval-mode BatchNorm folded into weights / bias)
# ---------------------------------------------------------------------------
def _fold_bn(conv_bias, gamma, beta, mean, var, eps=1e-5):
    scale = gamma / jnp.sqrt(var + eps)
    bias = (conv_bias - mean) * scale + beta
    return scale, bias


def _fold_conv_weight(w_oihw, scale):
    # (Cout, Cin, 3, 3) -> (Cout, 9*Cin), tap order (ky, kx) row-major.
    cout, cin = w_oihw.shape[:2]
    ws = w_oihw * scale[:, None, None, None]
    return jnp.transpose(ws, (0, 2, 3, 1)).reshape(cout, 9 * cin).astype(jnp.bfloat16)


def _fold_convtranspose_weight_fused(wt_iohw, scale):
    """ConvTranspose2d weight (Cin, Cout, 3, 3) -> fused 4-phase (4*Cout, 4*Cin).

    Row block phi = 2*ry + rx (output parity), column block t = 2*dy + dx
    (input tap).  Phase (ry, rx) uses kernel index ky = ry + 1 - 2*dy,
    kx = rx + 1 - 2*dx when in range, else a zero block.
    """
    cin, cout = wt_iohw.shape[:2]
    zero = jnp.zeros((cout, cin), jnp.float32)
    rows = []
    for ry in (0, 1):
        for rx in (0, 1):
            blocks = []
            for dy in (0, 1):
                ky = ry + 1 - 2 * dy
                for dx in (0, 1):
                    kx = rx + 1 - 2 * dx
                    if 0 <= ky <= 2 and 0 <= kx <= 2:
                        blk = wt_iohw[:, :, ky, kx].T * scale[:, None]
                    else:
                        blk = zero
                    blocks.append(blk)
            rows.append(jnp.concatenate(blocks, axis=1))
    return jnp.concatenate(rows, axis=0).astype(jnp.bfloat16)


class UpSampleLayerPallas:
    """Pallas re-implementation of the PyTorch UpSampleLayer (eval-mode BN)."""

    def __init__(self, in_ch, out_ch, key):
        mid = out_ch * 2
        self.in_ch, self.out_ch, self.mid = in_ch, out_ch, mid
        ks = jax.random.split(key, 6)
        init = lambda k, s: (0.1 * jax.random.normal(k, s)).astype(jnp.float32)

        # Raw parameters in PyTorch layouts (also used by the pure-JAX reference).
        self.w1 = init(ks[0], (mid, in_ch, 3, 3))
        self.b1 = init(ks[1], (mid,))
        self.w2 = init(ks[2], (mid, mid, 3, 3))
        self.b2 = init(ks[3], (mid,))
        self.wt = init(ks[4], (mid, out_ch, 3, 3))   # ConvTranspose2d: (Cin, Cout, kH, kW)
        self.bt = init(ks[5], (out_ch,))

        def bn(c):  # PyTorch init: gamma=1, beta=0, running_mean=0, running_var=1
            return (jnp.ones((c,), jnp.float32), jnp.zeros((c,), jnp.float32),
                    jnp.zeros((c,), jnp.float32), jnp.ones((c,), jnp.float32))

        self.bn1, self.bn2, self.bn3 = bn(mid), bn(mid), bn(out_ch)

        s1, f1 = _fold_bn(self.b1, *self.bn1)
        s2, f2 = _fold_bn(self.b2, *self.bn2)
        s3, f3 = _fold_bn(self.bt, *self.bn3)
        self.w1_mat = _fold_conv_weight(self.w1, s1)                    # (mid, 9*in_ch)
        self.w2_mat = _fold_conv_weight(self.w2, s2)                    # (mid, 9*mid)
        self.wt_mat = _fold_convtranspose_weight_fused(self.wt, s3)     # (4*out, 4*mid)
        self.bias1 = f1.reshape(-1, 1).astype(jnp.float32)
        self.bias2 = f2.reshape(-1, 1).astype(jnp.float32)
        self.bias3 = jnp.tile(f3, (4,)).reshape(-1, 1).astype(jnp.float32)

    @functools.partial(jax.jit, static_argnums=0)
    def __call__(self, x_nchw, skip_nchw):
        n, cin, h, w = x_nchw.shape
        mid, out_ch = self.mid, self.out_ch
        cout4 = 4 * out_ch
        wq, lw, _, l_in, l_slab = _fused_geometry(h, w)

        # Input prep (smallest tensor of the layer): cast to bf16 BEFORE padding,
        # build the flattened zero-padded (H+2, W+2) plane, pad lanes to l_in.
        xp = jnp.pad(x_nchw.astype(jnp.bfloat16), ((0, 0), (0, 0), (1, 1), (1, 1)))
        xf = xp.reshape(n, cin, (h + 2) * wq)
        xf = jnp.pad(xf, ((0, 0), (0, 0), (0, l_in - (h + 2) * wq)))

        kernel = _make_fused_kernel(h, w)

        out = pl.pallas_call(
            kernel,
            out_shape=jax.ShapeDtypeStruct((n, cout4, lw), jnp.bfloat16),
            grid=(n,),
            in_specs=[
                pl.BlockSpec((1, cin, l_in), lambda b: (b, 0, 0)),
                pl.BlockSpec(self.w1_mat.shape, lambda b: (0, 0)),
                pl.BlockSpec(self.bias1.shape, lambda b: (0, 0)),
                pl.BlockSpec(self.w2_mat.shape, lambda b: (0, 0)),
                pl.BlockSpec(self.bias2.shape, lambda b: (0, 0)),
                pl.BlockSpec(self.wt_mat.shape, lambda b: (0, 0)),
                pl.BlockSpec(self.bias3.shape, lambda b: (0, 0)),
            ],
            out_specs=pl.BlockSpec((1, cout4, lw), lambda b: (b, 0, 0)),
            scratch_shapes=[pltpu.VMEM((mid, l_slab), jnp.bfloat16),
                            pltpu.VMEM((mid, l_slab), jnp.bfloat16)],
            compiler_params=pltpu.CompilerParams(
                dimension_semantics=("parallel",)),
        )(xf, self.w1_mat, self.bias1, self.w2_mat, self.bias2,
          self.wt_mat, self.bias3)

        # Drop garbage lanes, interleave the 4 parity phases -> (N, Cout, 2H, 2W),
        # then concat with the skip tensor (single small XLA epilogue).
        y = out[:, :, :h * wq].reshape(n, 2, 2, out_ch, h, wq)[..., :w]
        y = y.transpose(0, 3, 4, 1, 5, 2).reshape(n, out_ch, 2 * h, 2 * w)
        return jnp.concatenate([y.astype(skip_nchw.dtype), skip_nchw], axis=1)


# ---------------------------------------------------------------------------
# Pure-JAX f32 reference (independent math: un-folded BN, XLA convolutions)
# ---------------------------------------------------------------------------
def _ref_forward(layer, x, skip, eps=1e-5):
    def bn(y, p):
        gamma, beta, mean, var = p
        inv = gamma / jnp.sqrt(var + eps)
        return (y - mean[None, :, None, None]) * inv[None, :, None, None] \
            + beta[None, :, None, None]

    def conv(h, w, b):
        y = lax.conv_general_dilated(
            h, w, window_strides=(1, 1), padding=((1, 1), (1, 1)),
            dimension_numbers=("NCHW", "OIHW", "NCHW"),
            precision=lax.Precision.HIGHEST)
        return y + b[None, :, None, None]

    def convt(h, wt, b):
        w = jnp.transpose(wt, (1, 0, 2, 3))[:, :, ::-1, ::-1]
        y = lax.conv_general_dilated(
            h, w, window_strides=(1, 1), padding=((1, 2), (1, 2)),
            lhs_dilation=(2, 2),
            dimension_numbers=("NCHW", "OIHW", "NCHW"),
            precision=lax.Precision.HIGHEST)
        return y + b[None, :, None, None]

    h = jnp.maximum(bn(conv(x, layer.w1, layer.b1), layer.bn1), 0.0)
    h = jnp.maximum(bn(conv(h, layer.w2, layer.b2), layer.bn2), 0.0)
    h = jnp.maximum(bn(convt(h, layer.wt, layer.bt), layer.bn3), 0.0)
    return jnp.concatenate([h, skip], axis=1)


if __name__ == "__main__":
    in_ch, out_ch = 4, 4
    N, H, W = 2, 16, 16

    key = jax.random.PRNGKey(0)
    k_params, k_x, k_skip = jax.random.split(key, 3)

    layer = UpSampleLayerPallas(in_ch, out_ch, k_params)

    x = jax.random.normal(k_x, (N, in_ch, H, W), dtype=jnp.float32)
    skip = jax.random.normal(k_skip, (N, out_ch, 2 * H, 2 * W), dtype=jnp.float32)

    y = jax.block_until_ready(layer(x, skip))

    assert y.shape == (N, 2 * out_ch, 2 * H, 2 * W), y.shape
    assert bool(jnp.all(jnp.isfinite(y)))

    # Cross-check against an independent pure-JAX f32 reference; the Pallas
    # path uses bf16 matmul operands / bf16 inter-stage + output storage,
    # hence the loose tolerance.
    y_ref = _ref_forward(layer, x, skip)
    max_err = float(jnp.max(jnp.abs(y - y_ref)))
    assert max_err < 0.1, f"max abs diff vs reference: {max_err}"

    print("KERNEL_OK")
</pallas_src>

<mosaic_0001>
module attributes {stable_mosaic.version = 11 : i64} {
  func.func @kernel(%arg0: i32, %arg1: memref<1x4x512xbf16, #tpu.memory_space<vmem>>, %arg2: memref<8x36xbf16, #tpu.memory_space<vmem>>, %arg3: memref<8x1xf32, #tpu.memory_space<vmem>>, %arg4: memref<8x72xbf16, #tpu.memory_space<vmem>>, %arg5: memref<8x1xf32, #tpu.memory_space<vmem>>, %arg6: memref<16x32xbf16, #tpu.memory_space<vmem>>, %arg7: memref<16x1xf32, #tpu.memory_space<vmem>>, %arg8: memref<1x16x384xbf16, #tpu.memory_space<vmem>>, %arg9: memref<8x640xbf16, #tpu.memory_space<vmem>>, %arg10: memref<8x640xbf16, #tpu.memory_space<vmem>>) attributes {dimension_semantics = [#tpu.dimension_semantics<parallel>], iteration_bounds = array<i64: 2>, scalar_prefetch = 0 : i64, scratch_operands = 2 : i64, tpu.core_type = #tpu.core_type<tc>, window_params = [{transform_indices = @transform_0, window_bounds = array<i64: 1, 4, 512>}, {pipeline_mode = #tpu.pipeline_mode<synchronous>, transform_indices = @transform_1, window_bounds = array<i64: 8, 36>}, {pipeline_mode = #tpu.pipeline_mode<synchronous>, transform_indices = @transform_2, window_bounds = array<i64: 8, 1>}, {pipeline_mode = #tpu.pipeline_mode<synchronous>, transform_indices = @transform_3, window_bounds = array<i64: 8, 72>}, {pipeline_mode = #tpu.pipeline_mode<synchronous>, transform_indices = @transform_4, window_bounds = array<i64: 8, 1>}, {pipeline_mode = #tpu.pipeline_mode<synchronous>, transform_indices = @transform_5, window_bounds = array<i64: 16, 32>}, {pipeline_mode = #tpu.pipeline_mode<synchronous>, transform_indices = @transform_6, window_bounds = array<i64: 16, 1>}, {transform_indices = @transform_7, window_bounds = array<i64: 1, 16, 384>}]} {
    %0 = tpu.iota {dimensions = array<i32: 1>} : vector<1x384xi32>
    %c18_i32 = arith.constant 18 : i32
    %c0_i32 = arith.constant 0 : i32
    %1 = arith.cmpi eq, %c18_i32, %c0_i32 : i32
    %c1_i32 = arith.constant 1 : i32
    %2 = arith.select %1, %c1_i32, %c18_i32 : i32
    %3 = vector.broadcast %2 : i32 to vector<1x384xi32>
    %4 = arith.remsi %0, %3 : vector<1x384xi32>
    %c0_i32_0 = arith.constant 0 : i32
    %5 = vector.broadcast %c0_i32_0 : i32 to vector<1x384xi32>
    %6 = arith.cmpi ne, %4, %5 : vector<1x384xi32>
    %c0_i32_1 = arith.constant 0 : i32
    %7 = vector.broadcast %c0_i32_1 : i32 to vector<1x384xi32>
    %8 = arith.cmpi slt, %4, %7 : vector<1x384xi32>
    %c0_i32_2 = arith.constant 0 : i32
    %9 = arith.cmpi slt, %2, %c0_i32_2 : i32
    %10 = vector.broadcast %9 : i1 to vector<1x384xi1>
    %11 = vector.broadcast %10 : vector<1x384xi1> to vector<1x384xi1>
    %12 = arith.xori %8, %11 : vector<1x384xi1>
    %13 = arith.andi %12, %6 : vector<1x384xi1>
    %14 = vector.broadcast %2 : i32 to vector<1x384xi32>
    %15 = arith.addi %4, %14 : vector<1x384xi32>
    %16 = arith.select %13, %15, %4 : vector<1x384xi1>, vector<1x384xi32>
    %c16_i32 = arith.constant 16 : i32
    %17 = vector.broadcast %c16_i32 : i32 to vector<1x384xi32>
    %18 = arith.cmpi slt, %16, %17 : vector<1x384xi32>
    %c288_i32 = arith.constant 288 : i32
    %19 = vector.broadcast %c288_i32 : i32 to vector<1x384xi32>
    %20 = arith.cmpi slt, %0, %19 : vector<1x384xi32>
    %21 = arith.andi %18, %20 : vector<1x384xi1>
    %c0 = arith.constant 0 : index
    %c0_3 = arith.constant 0 : index
    %c0_4 = arith.constant 0 : index
    %22 = vector.load %arg1[%c0, %c0_3, %c0_4] : memref<1x4x512xbf16, #tpu.memory_space<vmem>>, vector<1x4x512xbf16>
    %23 = vector.shape_cast %22 : vector<1x4x512xbf16> to vector<4x512xbf16>
    %24 = vector.extract_strided_slice %23 {offsets = [0, 0], sizes = [4, 384], strides = [1, 1]} : vector<4x512xbf16> to vector<4x384xbf16>
    %25 = vector.extract_strided_slice %23 {offsets = [0, 1], sizes = [4, 384], strides = [1, 1]} : vector<4x512xbf16> to vector<4x384xbf16>
    %26 = vector.extract_strided_slice %23 {offsets = [0, 2], sizes = [4, 384], strides = [1, 1]} : vector<4x512xbf16> to vector<4x384xbf16>
    %27 = vector.extract_strided_slice %23 {offsets = [0, 18], sizes = [4, 384], strides = [1, 1]} : vector<4x512xbf16> to vector<4x384xbf16>
    %28 = vector.extract_strided_slice %23 {offsets = [0, 19], sizes = [4, 384], strides = [1, 1]} : vector<4x512xbf16> to vector<4x384xbf16>
    %29 = vector.extract_strided_slice %23 {offsets = [0, 20], sizes = [4, 384], strides = [1, 1]} : vector<4x512xbf16> to vector<4x384xbf16>
    %30 = vector.extract_strided_slice %23 {offsets = [0, 36], sizes = [4, 384], strides = [1, 1]} : vector<4x512xbf16> to vector<4x384xbf16>
    %31 = vector.extract_strided_slice %23 {offsets = [0, 37], sizes = [4, 384], strides = [1, 1]} : vector<4x512xbf16> to vector<4x384xbf16>
    %32 = vector.extract_strided_slice %23 {offsets = [0, 38], sizes = [4, 384], strides = [1, 1]} : vector<4x512xbf16> to vector<4x384xbf16>
    %33 = tpu.concatenate %24, %25, %26, %27, %28, %29, %30, %31, %32 in 0 : vector<4x384xbf16>, vector<4x384xbf16>, vector<4x384xbf16>, vector<4x384xbf16>, vector<4x384xbf16>, vector<4x384xbf16>, vector<4x384xbf16>, vector<4x384xbf16>, vector<4x384xbf16> -> vector<36x384xbf16>
    %c0_5 = arith.constant 0 : index
    %c0_6 = arith.constant 0 : index
    %34 = vector.load %arg2[%c0_5, %c0_6] : memref<8x36xbf16, #tpu.memory_space<vmem>>, vector<8x36xbf16>
    %cst = arith.constant dense<0.000000e+00> : vector<8x384xf32>
    %35 = tpu.matmul %34, %33, %cst {dimension_numbers = #tpu.dot_dimension_numbers<[1], [0], [0], [1], [0, 0, 1, 1], [], []>} : vector<8x36xbf16>, vector<36x384xbf16>, vector<8x384xf32> -> vector<8x384xf32>
    %c0_7 = arith.constant 0 : index
    %c0_8 = arith.constant 0 : index
    %36 = vector.load %arg3[%c0_7, %c0_8] : memref<8x1xf32, #tpu.memory_space<vmem>>, vector<8x1xf32>
    %37 = vector.broadcast %36 : vector<8x1xf32> to vector<8x384xf32>
    %38 = arith.addf %35, %37 : vector<8x384xf32>
    %cst_9 = arith.constant 0.000000e+00 : f32
    %39 = vector.broadcast %cst_9 : f32 to vector<8x384xf32>
    %40 = arith.maximumf %38, %39 : vector<8x384xf32>
    %cst_10 = arith.constant 0.000000e+00 : bf16
    %41 = vector.broadcast %cst_10 : bf16 to vector<8x640xbf16>
    %c0_11 = arith.constant 0 : index
    %c0_12 = arith.constant 0 : index
    %42 = vector.load %arg9[%c0_11, %c0_12] : memref<8x640xbf16, #tpu.memory_space<vmem>>, vector<8x640xbf16>
    tpu.vector_store %arg9[%c0_11, %c0_12], %41 {strides = array<i32>} : memref<8x640xbf16, #tpu.memory_space<vmem>>, vector<8x640xbf16>,
    %cst_13 = arith.constant 0.000000e+00 : f32
    %43 = vector.shape_cast %21 : vector<1x384xi1> to vector<1x384xi1>
    %44 = vector.broadcast %43 : vector<1x384xi1> to vector<8x384xi1>
    %45 = vector.broadcast %cst_13 : f32 to vector<8x384xf32>
    %46 = arith.select %44, %40, %45 : vector<8x384xi1>, vector<8x384xf32>
    %47 = arith.truncf %46 : vector<8x384xf32> to vector<8x384xbf16>
    %c0_14 = arith.constant 0 : index
    %c128 = arith.constant 128 : index
    %48 = vector.load %arg9[%c0_14, %c128] : memref<8x640xbf16, #tpu.memory_space<vmem>>, vector<8x384xbf16>
    tpu.vector_store %arg9[%c0_14, %c128], %47 {strides = array<i32>} : memref<8x640xbf16, #tpu.memory_space<vmem>>, vector<8x384xbf16>,
    %c0_15 = arith.constant 0 : index
    %c109 = arith.constant 109 : index
    %49 = vector.load %arg9[%c0_15, %c109] : memref<8x640xbf16, #tpu.memory_space<vmem>>, vector<8x384xbf16>
    %c0_16 = arith.constant 0 : index
    %c110 = arith.constant 110 : index
    %50 = vector.load %arg9[%c0_16, %c110] : memref<8x640xbf16, #tpu.memory_space<vmem>>, vector<8x384xbf16>
    %c0_17 = arith.constant 0 : index
    %c111 = arith.constant 111 : index
    %51 = vector.load %arg9[%c0_17, %c111] : memref<8x640xbf16, #tpu.memory_space<vmem>>, vector<8x384xbf16>
    %c0_18 = arith.constant 0 : index
    %c127 = arith.constant 127 : index
    %52 = vector.load %arg9[%c0_18, %c127] : memref<8x640xbf16, #tpu.memory_space<vmem>>, vector<8x384xbf16>
    %c0_19 = arith.constant 0 : index
    %c128_20 = arith.constant 128 : index
    %53 = vector.load %arg9[%c0_19, %c128_20] : memref<8x640xbf16, #tpu.memory_space<vmem>>, vector<8x384xbf16>
    %c0_21 = arith.constant 0 : index
    %c129 = arith.constant 129 : index
    %54 = vector.load %arg9[%c0_21, %c129] : memref<8x640xbf16, #tpu.memory_space<vmem>>, vector<8x384xbf16>
    %c0_22 = arith.constant 0 : index
    %c145 = arith.constant 145 : index
    %55 = vector.load %arg9[%c0_22, %c145] : memref<8x640xbf16, #tpu.memory_space<vmem>>, vector<8x384xbf16>
    %c0_23 = arith.constant 0 : index
    %c146 = arith.constant 146 : index
    %56 = vector.load %arg9[%c0_23, %c146] : memref<8x640xbf16, #tpu.memory_space<vmem>>, vector<8x384xbf16>
    %c0_24 = arith.constant 0 : index
    %c147 = arith.constant 147 : index
    %57 = vector.load %arg9[%c0_24, %c147] : memref<8x640xbf16, #tpu.memory_space<vmem>>, vector<8x384xbf16>
    %58 = tpu.concatenate %49, %50, %51, %52, %53, %54, %55, %56, %57 in 0 : vector<8x384xbf16>, vector<8x384xbf16>, vector<8x384xbf16>, vector<8x384xbf16>, vector<8x384xbf16>, vector<8x384xbf16>, vector<8x384xbf16>, vector<8x384xbf16>, vector<8x384xbf16> -> vector<72x384xbf16>
    %c0_25 = arith.constant 0 : index
    %c0_26 = arith.constant 0 : index
    %59 = vector.load %arg4[%c0_25, %c0_26] : memref<8x72xbf16, #tpu.memory_space<vmem>>, vector<8x72xbf16>
    %cst_27 = arith.constant dense<0.000000e+00> : vector<8x384xf32>
    %60 = tpu.matmul %59, %58, %cst_27 {dimension_numbers = #tpu.dot_dimension_numbers<[1], [0], [0], [1], [0, 0, 1, 1], [], []>} : vector<8x72xbf16>, vector<72x384xbf16>, vector<8x384xf32> -> vector<8x384xf32>
    %c0_28 = arith.constant 0 : index
    %c0_29 = arith.constant 0 : index
    %61 = vector.load %arg5[%c0_28, %c0_29] : memref<8x1xf32, #tpu.memory_space<vmem>>, vector<8x1xf32>
    %62 = vector.broadcast %61 : vector<8x1xf32> to vector<8x384xf32>
    %63 = arith.addf %60, %62 : vector<8x384xf32>
    %cst_30 = arith.constant 0.000000e+00 : f32
    %64 = vector.broadcast %cst_30 : f32 to vector<8x384xf32>
    %65 = arith.maximumf %63, %64 : vector<8x384xf32>
    %cst_31 = arith.constant 0.000000e+00 : bf16
    %66 = vector.broadcast %cst_31 : bf16 to vector<8x640xbf16>
    %c0_32 = arith.constant 0 : index
    %c0_33 = arith.constant 0 : index
    %67 = vector.load %arg10[%c0_32, %c0_33] : memref<8x640xbf16, #tpu.memory_space<vmem>>, vector<8x640xbf16>
    tpu.vector_store %arg10[%c0_32, %c0_33], %66 {strides = array<i32>} : memref<8x640xbf16, #tpu.memory_space<vmem>>, vector<8x640xbf16>,
    %cst_34 = arith.constant 0.000000e+00 : f32
    %68 = vector.shape_cast %21 : vector<1x384xi1> to vector<1x384xi1>
    %69 = vector.broadcast %68 : vector<1x384xi1> to vector<8x384xi1>
    %70 = vector.broadcast %cst_34 : f32 to vector<8x384xf32>
    %71 = arith.select %69, %65, %70 : vector<8x384xi1>, vector<8x384xf32>
    %72 = arith.truncf %71 : vector<8x384xf32> to vector<8x384xbf16>
    %c0_35 = arith.constant 0 : index
    %c128_36 = arith.constant 128 : index
    %73 = vector.load %arg10[%c0_35, %c128_36] : memref<8x640xbf16, #tpu.memory_space<vmem>>, vector<8x384xbf16>
    tpu.vector_store %arg10[%c0_35, %c128_36], %72 {strides = array<i32>} : memref<8x640xbf16, #tpu.memory_space<vmem>>, vector<8x384xbf16>,
    %c0_37 = arith.constant 0 : index
    %c128_38 = arith.constant 128 : index
    %74 = vector.load %arg10[%c0_37, %c128_38] : memref<8x640xbf16, #tpu.memory_space<vmem>>, vector<8x384xbf16>
    %c0_39 = arith.constant 0 : index
    %c129_40 = arith.constant 129 : index
    %75 = vector.load %arg10[%c0_39, %c129_40] : memref<8x640xbf16, #tpu.memory_space<vmem>>, vector<8x384xbf16>
    %c0_41 = arith.constant 0 : index
    %c146_42 = arith.constant 146 : index
    %76 = vector.load %arg10[%c0_41, %c146_42] : memref<8x640xbf16, #tpu.memory_space<vmem>>, vector<8x384xbf16>
    %c0_43 = arith.constant 0 : index
    %c147_44 = arith.constant 147 : index
    %77 = vector.load %arg10[%c0_43, %c147_44] : memref<8x640xbf16, #tpu.memory_space<vmem>>, vector<8x384xbf16>
    %78 = tpu.concatenate %74, %75, %76, %77 in 0 : vector<8x384xbf16>, vector<8x384xbf16>, vector<8x384xbf16>, vector<8x384xbf16> -> vector<32x384xbf16>
    %c0_45 = arith.constant 0 : index
    %c0_46 = arith.constant 0 : index
    %79 = vector.load %arg6[%c0_45, %c0_46] : memref<16x32xbf16, #tpu.memory_space<vmem>>, vector<16x32xbf16>
    %cst_47 = arith.constant dense<0.000000e+00> : vector<16x384xf32>
    %80 = tpu.matmul %79, %78, %cst_47 {dimension_numbers = #tpu.dot_dimension_numbers<[1], [0], [0], [1], [0, 0, 1, 1], [], []>} : vector<16x32xbf16>, vector<32x384xbf16>, vector<16x384xf32> -> vector<16x384xf32>
    %c0_48 = arith.constant 0 : index
    %c0_49 = arith.constant 0 : index
    %81 = vector.load %arg7[%c0_48, %c0_49] : memref<16x1xf32, #tpu.memory_space<vmem>>, vector<16x1xf32>
    %82 = vector.broadcast %81 : vector<16x1xf32> to vector<16x384xf32>
    %83 = arith.addf %80, %82 : vector<16x384xf32>
    %cst_50 = arith.constant 0.000000e+00 : f32
    %84 = vector.broadcast %cst_50 : f32 to vector<16x384xf32>
    %85 = arith.maximumf %83, %84 : vector<16x384xf32>
    %86 = arith.truncf %85 : vector<16x384xf32> to vector<16x384xbf16>
    %c0_51 = arith.constant 0 : index
    %c0_52 = arith.constant 0 : index
    %c0_53 = arith.constant 0 : index
    %87 = vector.load %arg8[%c0_51, %c0_52, %c0_53] : memref<1x16x384xbf16, #tpu.memory_space<vmem>>, vector<1x16x384xbf16>
    %88 = vector.shape_cast %87 : vector<1x16x384xbf16> to vector<16x384xbf16>
    %89 = vector.shape_cast %86 : vector<16x384xbf16> to vector<1x16x384xbf16>
    tpu.vector_store %arg8[%c0_51, %c0_52, %c0_53], %89 {strides = array<i32>} : memref<1x16x384xbf16, #tpu.memory_space<vmem>>, vector<1x16x384xbf16>,
    return
  }
  func.func @transform_0(%arg0: i32) -> (i32, i32, i32) {
    %c0_i32 = arith.constant 0 : i32
    %c0_i32_0 = arith.constant 0 : i32
    %c0_i32_1 = arith.constant 0 : i32
    return %arg0, %c0_i32, %c0_i32_0 : i32, i32, i32
  }
  func.func @transform_1(%arg0: i32) -> (i32, i32) {
    %c0_i32 = arith.constant 0 : i32
    %c0_i32_0 = arith.constant 0 : i32
    %c0_i32_1 = arith.constant 0 : i32
    return %c0_i32, %c0_i32_0 : i32, i32
  }
  func.func @transform_2(%arg0: i32) -> (i32, i32) {
    %c0_i32 = arith.constant 0 : i32
    %c0_i32_0 = arith.constant 0 : i32
    %c0_i32_1 = arith.constant 0 : i32
    return %c0_i32, %c0_i32_0 : i32, i32
  }
  func.func @transform_3(%arg0: i32) -> (i32, i32) {
    %c0_i32 = arith.constant 0 : i32
    %c0_i32_0 = arith.constant 0 : i32
    %c0_i32_1 = arith.constant 0 : i32
    return %c0_i32, %c0_i32_0 : i32, i32
  }
  func.func @transform_4(%arg0: i32) -> (i32, i32) {
    %c0_i32 = arith.constant 0 : i32
    %c0_i32_0 = arith.constant 0 : i32
    %c0_i32_1 = arith.constant 0 : i32
    return %c0_i32, %c0_i32_0 : i32, i32
  }
  func.func @transform_5(%arg0: i32) -> (i32, i32) {
    %c0_i32 = arith.constant 0 : i32
    %c0_i32_0 = arith.constant 0 : i32
    %c0_i32_1 = arith.constant 0 : i32
    return %c0_i32, %c0_i32_0 : i32, i32
  }
  func.func @transform_6(%arg0: i32) -> (i32, i32) {
    %c0_i32 = arith.constant 0 : i32
    %c0_i32_0 = arith.constant 0 : i32
    %c0_i32_1 = arith.constant 0 : i32
    return %c0_i32, %c0_i32_0 : i32, i32
  }
  func.func @transform_7(%arg0: i32) -> (i32, i32, i32) {
    %c0_i32 = arith.constant 0 : i32
    %c0_i32_0 = arith.constant 0 : i32
    %c0_i32_1 = arith.constant 0 : i32
    return %arg0, %c0_i32, %c0_i32_0 : i32, i32, i32
  }
}

</mosaic_0001>

<llo_original>
// kernel: a_call__.1
$region0: #{a_call__.1}
  #allocation0 [shape = 'u32[]', space=smem, size = 0x4, offset = 0x4, fixed_abs, tag = 'smem constant byte address 0x4 - core index']
  #allocation1 [shape = 'u32[144,128]{1,0:T(1,128)}', space=vmem, size = 0x12000, scoped, tag = 'internal scratch']
  #allocation2 [shape = 'bf16[8,640]{1,0:T(8,128)(2,1)}', space=vmem, size = 0x2800, scoped, tag = 'scratch operand']
  #allocation3 [shape = 'bf16[8,640]{1,0:T(8,128)(2,1)}', space=vmem, size = 0x2800, scoped, tag = 'scratch operand']
  %s0 = inlined_call_operand.vmem [shape: bf16[2,4,512], index: 0, kind: input, shape index: {}]
  %s1 = inlined_call_operand.vmem [shape: bf16[8,36], index: 1, kind: input, shape index: {}]
  %s2 = inlined_call_operand.vmem [shape: f32[8,1], index: 2, kind: input, shape index: {}]
  %s3 = inlined_call_operand.vmem [shape: bf16[8,72], index: 3, kind: input, shape index: {}]
  %s4 = inlined_call_operand.vmem [shape: f32[8,1], index: 4, kind: input, shape index: {}]
  %s5 = inlined_call_operand.vmem [shape: bf16[16,32], index: 5, kind: input, shape index: {}]
  %s6 = inlined_call_operand.vmem [shape: f32[16,1], index: 6, kind: input, shape index: {}]
  %s7 = inlined_call_operand.vmem [shape: bf16[2,16,384], index: 7, kind: output, shape index: {}]
  %s8 = sld [smem:[#allocation0]]
  $region61: #{a_call__.1} parent=0
    _
  %s10 = ssub.s32 1, %s8
  %s11 = scalar_select 0, %s10, %s8
  loop: start=0, step=1, limit=4
  $region2: #{a_call__.1} parent=0 // loop_pre_header
    _
  $region3: #{a_call__.1} parent=0 // loop_header
    %s13 = sphi 0, %s17
    %p14 = scmp.ge.s32.totalorder %s13, 4
    %s23 = sphi 0, %s25
    %s26 = sphi 0, %s23
    %s27 = sphi 0, %s26
    %s43 = sphi 0, %s27
    %s47 = sphi 0, %s47
    %s49 = sphi 0, %s47
    %s50 = sphi 0, %s49
    %s64 = sphi 0, %s50
    %s68 = sphi 0, %s68
    %s70 = sphi 0, %s68
    %s71 = sphi 0, %s70
    %s85 = sphi 0, %s71
    %s89 = sphi 0, %s89
    %s91 = sphi 0, %s89
    %s92 = sphi 0, %s91
    %s106 = sphi 0, %s92
    %s110 = sphi 0, %s110
    %s112 = sphi 0, %s110
    %s113 = sphi 0, %s112
    %s127 = sphi 0, %s113
    %s131 = sphi 0, %s131
    %s133 = sphi 0, %s131
    %s134 = sphi 0, %s133
    %s148 = sphi 0, %s134
    %s152 = sphi 0, %s152
    %s154 = sphi 0, %s152
    %s155 = sphi 0, %s154
    %s169 = sphi 0, %s155
    %s175 = sphi 0, %s177
    %s178 = sphi 0, %s175
    %s179 = sphi 0, %s178
    %s195 = sphi 0, %s179
  $region4: #{a_call__.1} parent=0 // loop_header_branch
    %16 = sbr.rel (%p14) target = $region8
  $region5: #{a_call__.1} parent=0 // loop_body
    %s18 = ssub.s32 %s13, 1
    %s19 = ssub.s32 %s13, 2
    %s20 = sadd.s32 %s13, 1
    %s21 = ssub.s32 %s13, %s20
    %p22 = scmp.eq.s32.totalorder %s21, 0
    %s24 = sadd.s32 %s23, 1
    %s25 = scalar_select %p22, %s23, %s24
    %p28 = pneg %p22
    %p29 = scmp.eq.s32.totalorder %s13, 1
    %p30 = por %p28, %p29
    %p31 = scmp.ne.s32.totalorder %s23, %s26
    %p32 = scmp.eq.s32.totalorder %s13, 0
    %p33 = por %p31, %p32
    %p34 = scmp.ne.s32.totalorder %s23, %s26
    %p35 = scmp.eq.s32.totalorder %s18, 1
    %p36 = por %p34, %p35
    %p37 = scmp.ne.s32.totalorder %s26, %s27
    %p38 = scmp.eq.s32.totalorder %s18, 0
    %p39 = por %p37, %p38
    %p40 = scmp.ne.s32.totalorder %s26, %s27
    %p41 = scmp.eq.s32.totalorder %s19, 1
    %p42 = por %p40, %p41
    %p44 = scmp.ne.s32.totalorder %s27, %s43
    %p45 = scmp.eq.s32.totalorder %s19, 0
    %p46 = por %p44, %p45
    %s48 = sadd.s32 %s47, 1
    %p51 = scmp.eq.s32.totalorder %s13, 1
    %p52 = scmp.ne.s32.totalorder %s47, %s49
    %p53 = scmp.eq.s32.totalorder %s13, 0
    %p54 = por %p52, %p53
    %p55 = scmp.ne.s32.totalorder %s47, %s49
    %p56 = scmp.eq.s32.totalorder %s18, 1
    %p57 = por %p55, %p56
    %p58 = scmp.ne.s32.totalorder %s49, %s50
    %p59 = scmp.eq.s32.totalorder %s18, 0
    %p60 = por %p58, %p59
    %p61 = scmp.ne.s32.totalorder %s49, %s50
    %p62 = scmp.eq.s32.totalorder %s19, 1
    %p63 = por %p61, %p62
    %p65 = scmp.ne.s32.totalorder %s50, %s64
    %p66 = scmp.eq.s32.totalorder %s19, 0
    %p67 = por %p65, %p66
    %s69 = sadd.s32 %s68, 1
    %p72 = scmp.eq.s32.totalorder %s13, 1
    %p73 = scmp.ne.s32.totalorder %s68, %s70
    %p74 = scmp.eq.s32.totalorder %s13, 0
    %p75 = por %p73, %p74
    %p76 = scmp.ne.s32.totalorder %s68, %s70
    %p77 = scmp.eq.s32.totalorder %s18, 1
    %p78 = por %p76, %p77
    %p79 = scmp.ne.s32.totalorder %s70, %s71
    %p80 = scmp.eq.s32.totalorder %s18, 0
    %p81 = por %p79, %p80
    %p82 = scmp.ne.s32.totalorder %s70, %s71
    %p83 = scmp.eq.s32.totalorder %s19, 1
    %p84 = por %p82, %p83
    %p86 = scmp.ne.s32.totalorder %s71, %s85
    %p87 = scmp.eq.s32.totalorder %s19, 0
    %p88 = por %p86, %p87
    %s90 = sadd.s32 %s89, 1
    %p93 = scmp.eq.s32.totalorder %s13, 1
    %p94 = scmp.ne.s32.totalorder %s89, %s91
    %p95 = scmp.eq.s32.totalorder %s13, 0
    %p96 = por %p94, %p95
    %p97 = scmp.ne.s32.totalorder %s89, %s91
    %p98 = scmp.eq.s32.totalorder %s18, 1
    %p99 = por %p97, %p98
    %p100 = scmp.ne.s32.totalorder %s91, %s92
    %p101 = scmp.eq.s32.totalorder %s18, 0
    %p102 = por %p100, %p101
    %p103 = scmp.ne.s32.totalorder %s91, %s92
    %p104 = scmp.eq.s32.totalorder %s19, 1
    %p105 = por %p103, %p104
    %p107 = scmp.ne.s32.totalorder %s92, %s106
    %p108 = scmp.eq.s32.totalorder %s19, 0
    %p109 = por %p107, %p108
    %s111 = sadd.s32 %s110, 1
    %p114 = scmp.eq.s32.totalorder %s13, 1
    %p115 = scmp.ne.s32.totalorder %s110, %s112
    %p116 = scmp.eq.s32.totalorder %s13, 0
    %p117 = por %p115, %p116
    %p118 = scmp.ne.s32.totalorder %s110, %s112
    %p119 = scmp.eq.s32.totalorder %s18, 1
    %p120 = por %p118, %p119
    %p121 = scmp.ne.s32.totalorder %s112, %s113
    %p122 = scmp.eq.s32.totalorder %s18, 0
    %p123 = por %p121, %p122
    %p124 = scmp.ne.s32.totalorder %s112, %s113
    %p125 = scmp.eq.s32.totalorder %s19, 1
    %p126 = por %p124, %p125
    %p128 = scmp.ne.s32.totalorder %s113, %s127
    %p129 = scmp.eq.s32.totalorder %s19, 0
    %p130 = por %p128, %p129
    %s132 = sadd.s32 %s131, 1
    %p135 = scmp.eq.s32.totalorder %s13, 1
    %p136 = scmp.ne.s32.totalorder %s131, %s133
    %p137 = scmp.eq.s32.totalorder %s13, 0
    %p138 = por %p136, %p137
    %p139 = scmp.ne.s32.totalorder %s131, %s133
    %p140 = scmp.eq.s32.totalorder %s18, 1
    %p141 = por %p139, %p140
    %p142 = scmp.ne.s32.totalorder %s133, %s134
    %p143 = scmp.eq.s32.totalorder %s18, 0
    %p144 = por %p142, %p143
    %p145 = scmp.ne.s32.totalorder %s133, %s134
    %p146 = scmp.eq.s32.totalorder %s19, 1
    %p147 = por %p145, %p146
    %p149 = scmp.ne.s32.totalorder %s134, %s148
    %p150 = scmp.eq.s32.totalorder %s19, 0
    %p151 = por %p149, %p150
    %s153 = sadd.s32 %s152, 1
    %p156 = scmp.eq.s32.totalorder %s13, 1
    %p157 = scmp.ne.s32.totalorder %s152, %s154
    %p158 = scmp.eq.s32.totalorder %s13, 0
    %p159 = por %p157, %p158
    %p160 = scmp.ne.s32.totalorder %s152, %s154
    %p161 = scmp.eq.s32.totalorder %s18, 1
    %p162 = por %p160, %p161
    %p163 = scmp.ne.s32.totalorder %s154, %s155
    %p164 = scmp.eq.s32.totalorder %s18, 0
    %p165 = por %p163, %p164
    %p166 = scmp.ne.s32.totalorder %s154, %s155
    %p167 = scmp.eq.s32.totalorder %s19, 1
    %p168 = por %p166, %p167
    %p170 = scmp.ne.s32.totalorder %s155, %s169
    %p171 = scmp.eq.s32.totalorder %s19, 0
    %p172 = por %p170, %p171
    %s173 = ssub.s32 %s13, %s20
    %p174 = scmp.eq.s32.totalorder %s173, 0
    %s176 = sadd.s32 %s175, 1
    %s177 = scalar_select %p174, %s175, %s176
    %p180 = pneg %p174
    %p181 = scmp.eq.s32.totalorder %s13, 1
    %p182 = por %p180, %p181
    %p183 = scmp.ne.s32.totalorder %s175, %s178
    %p184 = scmp.eq.s32.totalorder %s13, 0
    %p185 = por %p183, %p184
    %p186 = scmp.ne.s32.totalorder %s175, %s178
    %p187 = scmp.eq.s32.totalorder %s18, 1
    %p188 = por %p186, %p187
    %p189 = scmp.ne.s32.totalorder %s178, %s179
    %p190 = scmp.eq.s32.totalorder %s18, 0
    %p191 = por %p189, %p190
    %p192 = scmp.ne.s32.totalorder %s178, %s179
    %p193 = scmp.eq.s32.totalorder %s19, 1
    %p194 = por %p192, %p193
    %p196 = scmp.ne.s32.totalorder %s179, %s195
    %p197 = scmp.eq.s32.totalorder %s19, 0
    %p198 = por %p196, %p197
    %p199 = scmp.le.s32.totalorder 1, %s13
    %p200 = scmp.lt.s32.totalorder %s13, 3
    %p201 = pnand %p199, %p200
    %p202 = pneg %p201
    // Predicated region
    $region9: #{a_call__.1} parent=5 // pred_check
      _
    $region10: #{a_call__.1} parent=5 // pred_check_branch
      %204 = sbr.rel (%p201) target = $region12
    $region11: #{a_call__.1} parent=5 // pred_region
      %s205 = ssub.s32 %s13, 1
      // Predicated region
      $region13: #{a_call__.1} parent=11 // pred_check
        %p206 = pneg %p60
      $region14: #{a_call__.1} parent=11 // pred_check_branch
        %208 = sbr.rel (%p206) target = $region16
      $region15: #{a_call__.1} parent=11 // pred_region
        _
      $region16: #{a_call__.1} parent=11 // pred_fallthru
        _
      // Predicated region
      $region17: #{a_call__.1} parent=11 // pred_check
        %p209 = pneg %p81
      $region18: #{a_call__.1} parent=11 // pred_check_branch
        %211 = sbr.rel (%p209) target = $region20
      $region19: #{a_call__.1} parent=11 // pred_region
        _
      $region20: #{a_call__.1} parent=11 // pred_fallthru
        _
      // Predicated region
      $region21: #{a_call__.1} parent=11 // pred_check
        %p212 = pneg %p102
      $region22: #{a_call__.1} parent=11 // pred_check_branch
        %214 = sbr.rel (%p212) target = $region24
      $region23: #{a_call__.1} parent=11 // pred_region
        _
      $region24: #{a_call__.1} parent=11 // pred_fallthru
        _
      // Predicated region
      $region25: #{a_call__.1} parent=11 // pred_check
        %p215 = pneg %p123
      $region26: #{a_call__.1} parent=11 // pred_check_branch
        %217 = sbr.rel (%p215) target = $region28
      $region27: #{a_call__.1} parent=11 // pred_region
        _
      $region28: #{a_call__.1} parent=11 // pred_fallthru
        _
      // Predicated region
      $region29: #{a_call__.1} parent=11 // pred_check
        %p218 = pneg %p144
      $region30: #{a_call__.1} parent=11 // pred_check_branch
        %220 = sbr.rel (%p218) target = $region32
      $region31: #{a_call__.1} parent=11 // pred_region
        _
      $region32: #{a_call__.1} parent=11 // pred_fallthru
        _
      // Predicated region
      $region33: #{a_call__.1} parent=11 // pred_check
        %p221 = pneg %p165
      $region34: #{a_call__.1} parent=11 // pred_check_branch
        %223 = sbr.rel (%p221) target = $region36
      $region35: #{a_call__.1} parent=11 // pred_region
        _
      $region36: #{a_call__.1} parent=11 // pred_fallthru
        _
    $region12: #{a_call__.1} parent=5 // pred_fallthru
      _
    %p224 = scmp.lt.s32.totalorder %s13, 2
    // Predicated region
    $region37: #{a_call__.1} parent=5 // pred_check
      %p225 = pneg %p224
    $region38: #{a_call__.1} parent=5 // pred_check_branch
      %227 = sbr.rel (%p225) target = $region40
    $region39: #{a_call__.1} parent=5 // pred_region
      // Predicated region
      $region41: #{a_call__.1} parent=39 // pred_check
        %p228 = pneg %p33
      $region42: #{a_call__.1} parent=39 // pred_check_branch
        %230 = sbr.rel (%p228) target = $region44
      $region43: #{a_call__.1} parent=39 // pred_region
        %p231 = scmp.lt.s32.totalorder %s13, 1
        %s232 = scalar_select %p231, %s13, 1
        %s233 = smul.addr %s232, 4
        %s234 = smul.addr %s233, 2
        %s235 = scalar_lea.vmem %s0, %s234
      $region44: #{a_call__.1} parent=39 // pred_fallthru
        _
    $region40: #{a_call__.1} parent=5 // pred_fallthru
      _
    %p236 = scmp.le.s32.totalorder 1, %s13
    %p237 = scmp.lt.s32.totalorder %s13, 3
    %p238 = pnand %p236, %p237
    %p239 = pneg %p238
    // Predicated region
    $region45: #{a_call__.1} parent=5 // pred_check
      _
    $region46: #{a_call__.1} parent=5 // pred_check_branch
      %241 = sbr.rel (%p238) target = $region48
    $region47: #{a_call__.1} parent=5 // pred_region
      %s242 = ssub.s32 %s13, 1
      %p243 = scmp.lt.s32.totalorder %s18, 1
      %s244 = scalar_select %p243, %s18, 1
      %s245 = smul.addr %s244, 4
      %s246 = smul.addr %s245, 2
      %s247 = scalar_lea.vmem %s0, %s246
      %p248 = pneg %p39
      %p249 = pneg %p36
      %p250 = pneg %p60
      %p251 = pneg %p57
      %p252 = pneg %p81
      %p253 = pneg %p78
      %p254 = pneg %p102
      %p255 = pneg %p99
      %p256 = pneg %p123
      %p257 = pneg %p120
      %p258 = pneg %p144
      %p259 = pneg %p141
      %p260 = pneg %p165
      %p261 = pneg %p162
      %p262 = pneg %p191
      %p263 = pneg %p188
      %p264 = scmp.lt.s32.totalorder %s18, 1
      %s265 = scalar_select %p264, %s18, 1
      %s266 = smul.addr %s265, 6
      %s267 = smul.addr %s266, 4
      %s268 = scalar_lea.vmem %s7, %s267
      %p269 = scmp.lt.s32.totalorder %s18, 1
      %s270 = scalar_select %p269, %s18, 1
      %s271 = smul.addr %s270, 4
      %s272 = smul.addr %s271, 2
      %s273 = scalar_lea.vmem %s0, %s272
      %p274 = scmp.lt.s32.totalorder %s18, 1
      %s275 = scalar_select %p274, %s18, 1
      %s276 = smul.addr %s275, 6
      %s277 = smul.addr %s276, 4
      %s278 = scalar_lea.vmem %s7, %s277
      %v280 = vlaneseq
      %v281 = vand.u32 %v280, 127
      %v282 = vadd.s32 %v281, 128
      %v283 = vadd.s32 %v281, 256
      %vm284 = vcmp.lt.s32.totalorder %v281, 0
      %v285 = vsub.s32 0, %v281
      %v286 = vsel %vm284, %v285, %v281
      %v287 = vmul.u32.u64.compose %v286, 3817748708
      %v288 = vextract.low.u32 %v287
      %v289 = vextract.high.u32 %v287
      %v290 = vshrl.u32 %v289, 4
      %v291 = vmul.u32 %v290, 18
      %v292 = vsub.s32 %v286, %v291
      %v293 = vsub.s32 0, %v292
      %v294 = vsel %vm284, %v293, %v292
      %vm295 = vcmp.lt.s32.totalorder %v282, 0
      %v296 = vsub.s32 0, %v282
      %v297 = vsel %vm295, %v296, %v282
      %v298 = vmul.u32.u64.compose %v297, 3817748708
      %v299 = vextract.low.u32 %v298
      %v300 = vextract.high.u32 %v298
      %v301 = vshrl.u32 %v300, 4
      %v302 = vmul.u32 %v301, 18
      %v303 = vsub.s32 %v297, %v302
      %v304 = vsub.s32 0, %v303
      %v305 = vsel %vm295, %v304, %v303
      %vm306 = vcmp.lt.s32.totalorder %v283, 0
      %v307 = vsub.s32 0, %v283
      %v308 = vsel %vm306, %v307, %v283
      %v309 = vmul.u32.u64.compose %v308, 3817748708
      %v310 = vextract.low.u32 %v309
      %v311 = vextract.high.u32 %v309
      %v312 = vshrl.u32 %v311, 4
      %v313 = vmul.u32 %v312, 18
      %v314 = vsub.s32 %v308, %v313
      %v315 = vsub.s32 0, %v314
      %v316 = vsel %vm306, %v315, %v314
      %vm317 = vcmp.ne.s32.totalorder %v294, 0
      %vm318 = vcmp.ne.s32.totalorder %v305, 0
      %vm319 = vcmp.ne.s32.totalorder %v316, 0
      %vm320 = vcmp.lt.s32.totalorder %v294, 0
      %vm321 = vcmp.lt.s32.totalorder %v305, 0
      %vm322 = vcmp.lt.s32.totalorder %v316, 0
      %vm323 = vmand %vm320, %vm317
      %vm324 = vmand %vm321, %vm318
      %vm325 = vmand %vm322, %vm319
      %v326 = vadd.s32 %v294, 18
      %v327 = vadd.s32 %v305, 18
      %v328 = vadd.s32 %v316, 18
      %v329 = vsel %vm323, %v326, %v294
      %v330 = vsel %vm324, %v327, %v305
      %v331 = vsel %vm325, %v328, %v316
      %vm332 = vcmp.lt.s32.totalorder %v329, 16
      %vm333 = vcmp.lt.s32.totalorder %v330, 16
      %vm334 = vcmp.lt.s32.totalorder %v331, 16
      %vm335 = vcmp.lt.s32.totalorder %v281, 288
      %vm336 = vcmp.lt.s32.totalorder %v282, 288
      %vm337 = vcmp.lt.s32.totalorder %v283, 288
      %vm338 = vmand %vm332, %vm335
      %vm339 = vmand %vm333, %vm336
      %vm340 = vmand %vm334, %vm337
      %v341 = vld [vmem:[%s273] sm:$0xff]
      %v343 = vcombine.high %v341, %v341
      %v345 = vunpack.c.l.s4 1983009808
      %v346 = vunpack.c.0.s8 %v345
      %v347 = vlaneseq
      %v348 = vshrl.u32 %v347, 7
      %v349 = vsub.s32 %v346, %v348
      %v350 = vrot.slane %v341, %v349
      %v352 = vunpack.c.l.s4 1983009808
      %v353 = vunpack.c.0.s8 %v352
      %v354 = vlaneseq
      %v355 = vshrl.u32 %v354, 7
      %v356 = vsub.s32 %v353, %v355
      %v357 = vrot.slane %v343, %v356
      %v358 = vcombine.high %v350, %v350
      %v359 = vcombine.low %v341, %v341
      %v361 = vunpack.c.l.s4 1983009808
      %v362 = vunpack.c.0.s8 %v361
      %v363 = vlaneseq
      %v364 = vshrl.u32 %v363, 7
      %v365 = vsub.s32 %v362, %v364
      %v366 = vrot.slane %v359, %v365
      %v367 = vcombine.high %v366, %v366
      %368 = vrot.lane.b32.xlu0 %v366, 127
      %v369 = vpop.permute.xlu0 %368
      %370 = vrot.lane.b32.xlu0 %v367, 127
      %v371 = vpop.permute.xlu0 %370
      %372 = vrot.lane.b32.xlu0 %v350, 127
      %v373 = vpop.permute.xlu0 %372
      %374 = vrot.lane.b32.xlu0 %v358, 127
      %v375 = vpop.permute.xlu0 %374
      %vm376 = vcmask 1039360
      %v377 = vsel %vm376, %v369, %v371
      %v378 = vsel %vm376, %v371, %v373
      %v379 = vsel %vm376, %v373, %v375
      %v380 = vcombine.low %v350, %v350
      %v381 = vcombine.low %v357, %v357
      %382 = vrot.lane.b32.xlu0 %v380, 126
      %v383 = vpop.permute.xlu0 %382
      %384 = vrot.lane.b32.xlu0 %v350, 126
      %v385 = vpop.permute.xlu0 %384
      %386 = vrot.lane.b32.xlu0 %v381, 126
      %v387 = vpop.permute.xlu0 %386
      %388 = vrot.lane.b32.xlu0 %v357, 126
      %v389 = vpop.permute.xlu0 %388
      %vm390 = vcmask 1031168
      %v391 = vsel %vm390, %v383, %v385
      %v392 = vsel %vm390, %v385, %v387
      %v393 = vsel %vm390, %v387, %v389
      %v394 = vcombine.low %v366, %v366
      %395 = vrot.lane.b32.xlu0 %v394, 110
      %v396 = vpop.permute.xlu0 %395
      %397 = vrot.lane.b32.xlu0 %v366, 110
      %v398 = vpop.permute.xlu0 %397
      %399 = vrot.lane.b32.xlu0 %v380, 110
      %v400 = vpop.permute.xlu0 %399
      %401 = vrot.lane.b32.xlu0 %v350, 110
      %v402 = vpop.permute.xlu0 %401
      %vm403 = vcmask 900096
      %v404 = vsel %vm403, %v396, %v398
      %v405 = vsel %vm403, %v398, %v400
      %v406 = vsel %vm403, %v400, %v402
      %v407 = vcombine.high %v357, %v357
      %408 = vrot.lane.b32.xlu0 %v350, 109
      %v409 = vpop.permute.xlu0 %408
      %410 = vrot.lane.b32.xlu0 %v358, 109
      %v411 = vpop.permute.xlu0 %410
      %412 = vrot.lane.b32.xlu0 %v357, 109
      %v413 = vpop.permute.xlu0 %412
      %414 = vrot.lane.b32.xlu0 %v407, 109
      %v415 = vpop.permute.xlu0 %414
      %vm416 = vcmask 891904
      %v417 = vsel %vm416, %v409, %v411
      %v418 = vsel %vm416, %v411, %v413
      %v419 = vsel %vm416, %v413, %v415
      %420 = vrot.lane.b32.xlu0 %v366, 108
      %v421 = vpop.permute.xlu0 %420
      %422 = vrot.lane.b32.xlu0 %v367, 108
      %v423 = vpop.permute.xlu0 %422
      %424 = vrot.lane.b32.xlu0 %v350, 108
      %v425 = vpop.permute.xlu0 %424
      %426 = vrot.lane.b32.xlu0 %v358, 108
      %v427 = vpop.permute.xlu0 %426
      %vm428 = vcmask 883712
      %v429 = vsel %vm428, %v421, %v423
      %v430 = vsel %vm428, %v423, %v425
      %v431 = vsel %vm428, %v425, %v427
      %432 = vrot.lane.b32.xlu0 %v380, 92
      %v433 = vpop.permute.xlu0 %432
      %434 = vrot.lane.b32.xlu0 %v350, 92
      %v435 = vpop.permute.xlu0 %434
      %436 = vrot.lane.b32.xlu0 %v381, 92
      %v437 = vpop.permute.xlu0 %436
      %438 = vrot.lane.b32.xlu0 %v357, 92
      %v439 = vpop.permute.xlu0 %438
      %vm440 = vcmask 752640
      %v441 = vsel %vm440, %v433, %v435
      %v442 = vsel %vm440, %v435, %v437
      %v443 = vsel %vm440, %v437, %v439
      %444 = vrot.lane.b32.xlu0 %v394, 91
      %v445 = vpop.permute.xlu0 %444
      %446 = vrot.lane.b32.xlu0 %v366, 91
      %v447 = vpop.permute.xlu0 %446
      %448 = vrot.lane.b32.xlu0 %v380, 91
      %v449 = vpop.permute.xlu0 %448
      %450 = vrot.lane.b32.xlu0 %v350, 91
      %v451 = vpop.permute.xlu0 %450
      %vm452 = vcmask 744448
      %v453 = vsel %vm452, %v445, %v447
      %v454 = vsel %vm452, %v447, %v449
      %v455 = vsel %vm452, %v449, %v451
      %456 = vrot.lane.b32.xlu0 %v350, 90
      %v457 = vpop.permute.xlu0 %456
      %458 = vrot.lane.b32.xlu0 %v358, 90
      %v459 = vpop.permute.xlu0 %458
      %460 = vrot.lane.b32.xlu0 %v357, 90
      %v461 = vpop.permute.xlu0 %460
      %462 = vrot.lane.b32.xlu0 %v407, 90
      %v463 = vpop.permute.xlu0 %462
      %vm464 = vcmask 736256
      %v465 = vsel %vm464, %v457, %v459
      %v466 = vsel %vm464, %v459, %v461
      %v467 = vsel %vm464, %v461, %v463
      %vm468 = vcmask 1041408
      %v471 = vsel %vm468, %v350, %v377
      %v474 = vsel %vm468, %v358, %v378
      %v477 = vsel %vm468, %v357, %v379
      %vm478 = vcmask 1043456
      %v480 = vsel %vm478, %v471, %v391
      %v482 = vsel %vm478, %v474, %v392
      %v484 = vsel %vm478, %v477, %v393
      %vm485 = vcmask 1045504
      %v487 = vsel %vm485, %v480, %v404
      %v490 = vsel %vm485, %v482, %v405
      %v493 = vsel %vm485, %v484, %v406
      %v497 = vsel %vm468, %v417, %v429
      %v500 = vsel %vm468, %v418, %v430
      %v503 = vsel %vm468, %v419, %v431
      %v505 = vsel %vm478, %v497, %v441
      %v507 = vsel %vm478, %v500, %v442
      %v509 = vsel %vm478, %v503, %v443
      %v511 = vsel %vm485, %v505, %v453
      %v514 = vsel %vm485, %v507, %v454
      %v517 = vsel %vm485, %v509, %v455
      %v519 = vld [vmem:[%s1] sm:$0xf]
      %v520 = vld [vmem:[%s2] sm:$0xff]
      %522 = vset.pattern.permute.xlu0 0
      %523 = vperm.xlu0 %522, %v520
      %v524 = vpop.permute.xlu0 %523
      %vm526 = vcmask 293888
      %v528 = vsel %vm526, %v519, 0
      %v531 = vsel %vm468, %v465, 0
      %v534 = vsel %vm468, %v466, 0
      %v537 = vsel %vm468, %v467, 0
      %539 = vmatprep.subr.bf16.mxu0 %v490
      %540 = vmatpush1.bf16.msra.mxu0 %v487
      %541 = vmatprep.subr.bf16.mxu0 %v514
      %542 = vmatpush1.bf16.msra.mxu0 %v511
      %543 = vmatprep.subr.bf16.mxu0 %v534
      %544 = vmatpush1.bf16.msra.mxu0 %v531
      %545 = vmatprep.subr.bf16.mxu0 0
      %546 = vmatpush1.bf16.msra.mxu0 0
      %547 = vmatprep.subr.bf16.mxu0 0
      %548 = vmatpush1.bf16.msra.mxu0 0
      %549 = vmatprep.subr.bf16.mxu0 0
      %550 = vmatpush1.bf16.msra.mxu0 0
      %551 = vmatprep.subr.bf16.mxu0 0
      %552 = vmatpush1.bf16.msra.mxu0 0
      %553 = vmatprep.subr.bf16.mxu0 0
      %554 = vmatpush1.bf16.msra.mxu0 0
      %555 = vmatprep.subr.bf16.mxu0 0
      %556 = vmatpush1.bf16.msra.mxu0 0
      %557 = vmatprep.subr.bf16.mxu0 0
      %558 = vmatpush1.bf16.msra.mxu0 0
      %559 = vmatprep.subr.bf16.mxu0 0
      %560 = vmatpush1.bf16.msra.mxu0 0
      %561 = vmatprep.subr.bf16.mxu0 0
      %562 = vmatpush1.bf16.msra.mxu0 0
      %563 = vmatprep.subr.bf16.mxu0 0
      %564 = vmatpush1.bf16.msra.mxu0 0
      %565 = vmatprep.subr.bf16.mxu0 0
      %566 = vmatpush1.bf16.msra.mxu0 0
      %567 = vmatprep.subr.bf16.mxu0 0
      %568 = vmatpush1.bf16.msra.mxu0 0
      %569 = vmatprep.subr.bf16.mxu0 0
      %570 = vmatpush1.bf16.msra.mxu0 0
      %571 = vmatprep.mubr.bf16.mxu0 0
      %572 = vmatmul.mubr.bf16.gmra.mrb[0].mxu0 %v528
      %v573 = vpop.f32.mrb[0].mxu0
      %v574 = vadd.f32 %v524, %v573
      %v575 = vpop.f32.mrb[0].mxu0
      %v576 = vadd.f32 %v524, %v575
      %v577 = vpop.f32.mrb[0].mxu0
      %v578 = vpop.f32.mrb[0].mxu0
      %579 = vdwg.mxu0
      %580 = vmatprep.subr.bf16.mxu0 0
      %581 = vmatpush1.bf16.msra.mxu0 %v493
      %582 = vmatprep.subr.bf16.mxu0 0
      %583 = vmatpush1.bf16.msra.mxu0 %v517
      %584 = vmatprep.subr.bf16.mxu0 0
      %585 = vmatpush1.bf16.msra.mxu0 %v537
      %586 = vmatprep.subr.bf16.mxu0 0
      %587 = vmatpush1.bf16.msra.mxu0 0
      %588 = vmatprep.subr.bf16.mxu0 0
      %589 = vmatpush1.bf16.msra.mxu0 0
      %590 = vmatprep.subr.bf16.mxu0 0
      %591 = vmatpush1.bf16.msra.mxu0 0
      %592 = vmatprep.subr.bf16.mxu0 0
      %593 = vmatpush1.bf16.msra.mxu0 0
      %594 = vmatprep.subr.bf16.mxu0 0
      %595 = vmatpush1.bf16.msra.mxu0 0
      %596 = vmatprep.subr.bf16.mxu0 0
      %597 = vmatpush1.bf16.msra.mxu0 0
      %598 = vmatprep.subr.bf16.mxu0 0
      %599 = vmatpush1.bf16.msra.mxu0 0
      %600 = vmatprep.subr.bf16.mxu0 0
      %601 = vmatpush1.bf16.msra.mxu0 0
      %602 = vmatprep.subr.bf16.mxu0 0
      %603 = vmatpush1.bf16.msra.mxu0 0
      %604 = vmatprep.subr.bf16.mxu0 0
      %605 = vmatpush1.bf16.msra.mxu0 0
      %606 = vmatprep.subr.bf16.mxu0 0
      %607 = vmatpush1.bf16.msra.mxu0 0
      %608 = vmatprep.subr.bf16.mxu0 0
      %609 = vmatpush1.bf16.msra.mxu0 0
      %610 = vmatprep.subr.bf16.mxu0 0
      %611 = vmatpush1.bf16.msra.mxu0 0
      %612 = vmatprep.mubr.bf16.mxu0 0
      %613 = vmatmul.mubr.bf16.gmra.mrb[0].mxu0 %v528
      %v614 = vpop.f32.mrb[0].mxu0
      %v615 = vadd.f32 %v524, %v614
      %v616 = vpop.f32.mrb[0].mxu0
      %v617 = vpop.f32.mrb[0].mxu0
      %v618 = vpop.f32.mrb[0].mxu0
      %619 = vdwg.mxu0
      %v620 = vmax.f32 %v574, 0.0
      %v621 = vmax.f32 %v576, 0.0
      %v622 = vmax.f32 %v615, 0.0
      %623 = vst [vmem:[#allocation2] sm:$0xff] 0
      %624 = vst [vmem:[#allocation2 + $0x8] sm:$0xff] 0
      %625 = vst [vmem:[#allocation2 + $0x10] sm:$0xf] 0
      %v626 = vsel %vm338, 1, 0
      %v627 = vsel %vm339, 1, 0
      %v628 = vsel %vm340, 1, 0
      %vm629 = vcmp.eq.s32.totalorder %v626, 1
      %vm630 = vcmp.eq.s32.totalorder %v627, 1
      %vm631 = vcmp.eq.s32.totalorder %v628, 1
      %v632 = vsel %vm629, %v620, 0.0
      %v633 = vsel %vm630, %v621, 0.0
      %v634 = vsel %vm631, %v622, 0.0
      %v635 = vpack.c.bf16 %v632, %v632
      %v636 = vpack.c.bf16 %v633, %v633
      %v637 = vpack.c.bf16 %v634, %v634
      %v641 = vunpack.c.l.b16 %v635
      %v642 = vunpack.c.l.b16 %v636
      %v643 = vunpack.c.l.b16 %v637
      %v644 = vpack.c.b16 %v642, %v641
      %v645 = vpack.c.b16 %v643, %v643
      %648 = vst [vmem:[#allocation2 + $0x4] sm:$0xff] %v644
      %649 = vst [vmem:[#allocation2 + $0xc] sm:$0xf] %v645
      %v650 = vld [vmem:[#allocation2] sm:$0xff]
      %v651 = vld [vmem:[#allocation2 + $0x8] sm:$0xff]
      %v652 = vld [vmem:[#allocation2 + $0x4] sm:$0xff]
      %v653 = vld [vmem:[#allocation2 + $0xc] sm:$0xf]
      %v654 = vld [vmem:[#allocation2 + $0x4] sm:$0xff]
      %v655 = vld [vmem:[#allocation2 + $0xc] sm:$0xff]
      %v658 = vunpack.c.l.b16 %v650
      %v659 = vunpack.c.h.b16 %v650
      %v660 = vunpack.c.l.b16 %v651
      %v661 = vunpack.c.h.b16 %v651
      %v662 = vpack.c.b16 %v658, %v658
      %v663 = vpack.c.b16 %v659, %v659
      %v664 = vpack.c.b16 %v660, %v660
      %v665 = vpack.c.b16 %v661, %v661
      %666 = vrot.lane.b32.xlu0 %v662, 127
      %v667 = vpop.permute.xlu0 %666
      %668 = vrot.lane.b32.xlu0 %v663, 127
      %v669 = vpop.permute.xlu0 %668
      %670 = vrot.lane.b32.xlu0 %v664, 127
      %v671 = vpop.permute.xlu0 %670
      %672 = vrot.lane.b32.xlu0 %v665, 127
      %v673 = vpop.permute.xlu0 %672
      %v674 = vsel %vm376, %v667, %v669
      %v675 = vsel %vm376, %v669, %v671
      %v676 = vsel %vm376, %v671, %v673
      %677 = vrot.lane.b32.xlu0 %v662, 126
      %v678 = vpop.permute.xlu0 %677
      %679 = vrot.lane.b32.xlu0 %v663, 126
      %v680 = vpop.permute.xlu0 %679
      %681 = vrot.lane.b32.xlu0 %v664, 126
      %v682 = vpop.permute.xlu0 %681
      %683 = vrot.lane.b32.xlu0 %v665, 126
      %v684 = vpop.permute.xlu0 %683
      %v685 = vsel %vm390, %v678, %v680
      %v686 = vsel %vm390, %v680, %v682
      %v687 = vsel %vm390, %v682, %v684
      %688 = vrot.lane.b32.xlu0 %v662, 110
      %v689 = vpop.permute.xlu0 %688
      %690 = vrot.lane.b32.xlu0 %v663, 110
      %v691 = vpop.permute.xlu0 %690
      %692 = vrot.lane.b32.xlu0 %v664, 110
      %v693 = vpop.permute.xlu0 %692
      %694 = vrot.lane.b32.xlu0 %v665, 110
      %v695 = vpop.permute.xlu0 %694
      %v696 = vsel %vm403, %v689, %v691
      %v697 = vsel %vm403, %v691, %v693
      %v698 = vsel %vm403, %v693, %v695
      %v701 = vunpack.c.l.b16 %v652
      %v702 = vunpack.c.h.b16 %v652
      %v703 = vunpack.c.l.b16 %v653
      %v704 = vpack.c.b16 %v701, %v701
      %v705 = vpack.c.b16 %v702, %v702
      %v706 = vpack.c.b16 %v703, %v703
      %707 = vrot.lane.b32.xlu0 %v704, 109
      %v708 = vpop.permute.xlu0 %707
      %709 = vrot.lane.b32.xlu0 %v705, 109
      %v710 = vpop.permute.xlu0 %709
      %711 = vrot.lane.b32.xlu0 %v706, 109
      %v712 = vpop.permute.xlu0 %711
      %v713 = vsel %vm416, %v708, %v710
      %v714 = vsel %vm416, %v710, %v712
      %v717 = vunpack.c.l.b16 %v654
      %v718 = vunpack.c.h.b16 %v654
      %v719 = vunpack.c.l.b16 %v655
      %v720 = vunpack.c.h.b16 %v655
      %v721 = vpack.c.b16 %v717, %v717
      %v722 = vpack.c.b16 %v718, %v718
      %v723 = vpack.c.b16 %v719, %v719
      %v724 = vpack.c.b16 %v720, %v720
      %725 = vrot.lane.b32.xlu0 %v721, 108
      %v726 = vpop.permute.xlu0 %725
      %727 = vrot.lane.b32.xlu0 %v722, 108
      %v728 = vpop.permute.xlu0 %727
      %729 = vrot.lane.b32.xlu0 %v723, 108
      %v730 = vpop.permute.xlu0 %729
      %731 = vrot.lane.b32.xlu0 %v724, 108
      %v732 = vpop.permute.xlu0 %731
      %v733 = vsel %vm428, %v726, %v728
      %v734 = vsel %vm428, %v728, %v730
      %v735 = vsel %vm428, %v730, %v732
      %736 = vrot.lane.b32.xlu0 %v721, 92
      %v737 = vpop.permute.xlu0 %736
      %738 = vrot.lane.b32.xlu0 %v722, 92
      %v739 = vpop.permute.xlu0 %738
      %740 = vrot.lane.b32.xlu0 %v723, 92
      %v741 = vpop.permute.xlu0 %740
      %742 = vrot.lane.b32.xlu0 %v724, 92
      %v743 = vpop.permute.xlu0 %742
      %v744 = vsel %vm440, %v737, %v739
      %v745 = vsel %vm440, %v739, %v741
      %v746 = vsel %vm440, %v741, %v743
      %747 = vrot.lane.b32.xlu0 %v721, 91
      %v748 = vpop.permute.xlu0 %747
      %749 = vrot.lane.b32.xlu0 %v722, 91
      %v750 = vpop.permute.xlu0 %749
      %751 = vrot.lane.b32.xlu0 %v723, 91
      %v752 = vpop.permute.xlu0 %751
      %753 = vrot.lane.b32.xlu0 %v724, 91
      %v754 = vpop.permute.xlu0 %753
      %v755 = vsel %vm452, %v748, %v750
      %v756 = vsel %vm452, %v750, %v752
      %v757 = vsel %vm452, %v752, %v754
      %758 = vrot.lane.b32.xlu0 %v721, 90
      %v759 = vpop.permute.xlu0 %758
      %760 = vrot.lane.b32.xlu0 %v722, 90
      %v761 = vpop.permute.xlu0 %760
      %762 = vrot.lane.b32.xlu0 %v723, 90
      %v763 = vpop.permute.xlu0 %762
      %764 = vrot.lane.b32.xlu0 %v724, 90
      %v765 = vpop.permute.xlu0 %764
      %v766 = vsel %vm464, %v759, %v761
      %v767 = vsel %vm464, %v761, %v763
      %v768 = vsel %vm464, %v763, %v765
      %v771 = vsel %vm478, %v662, %v674
      %v774 = vsel %vm478, %v663, %v675
      %v777 = vsel %vm478, %v664, %v676
      %v780 = vsel %vm478, %v665, %v673
      %v783 = vsel %vm478, %v685, %v696
      %v786 = vsel %vm478, %v686, %v697
      %v789 = vsel %vm478, %v687, %v698
      %v792 = vsel %vm478, %v684, %v695
      %v795 = vsel %vm478, %v708, %v726
      %v798 = vsel %vm478, %v713, %v733
      %v801 = vsel %vm478, %v714, %v734
      %v804 = vsel %vm478, %v712, %v735
      %v807 = vsel %vm478, %v737, %v748
      %v810 = vsel %vm478, %v744, %v755
      %v813 = vsel %vm478, %v745, %v756
      %v816 = vsel %vm478, %v746, %v757
      %v817 = vld [vmem:[%s3] sm:$0xf]
      %v818 = vld [vmem:[%s4] sm:$0xff]
      %820 = vset.pattern.permute.xlu0 0
      %821 = vperm.xlu0 %820, %v818
      %v822 = vpop.permute.xlu0 %821
      %840 = vrot.lane.b32.xlu0 %v771, 19
      %v841 = vpop.permute.xlu0 %840
      %842 = vrot.lane.b32.xlu0 %v774, 19
      %v843 = vpop.permute.xlu0 %842
      %844 = vrot.lane.b32.xlu0 %v777, 19
      %v845 = vpop.permute.xlu0 %844
      %846 = vrot.lane.b32.xlu0 %v780, 19
      %v847 = vpop.permute.xlu0 %846
      %848 = vrot.lane.b32.xlu0 %v783, 19
      %v849 = vpop.permute.xlu0 %848
      %850 = vrot.lane.b32.xlu0 %v786, 19
      %v851 = vpop.permute.xlu0 %850
      %852 = vrot.lane.b32.xlu0 %v789, 19
      %v853 = vpop.permute.xlu0 %852
      %854 = vrot.lane.b32.xlu0 %v792, 19
      %v855 = vpop.permute.xlu0 %854
      %856 = vrot.lane.b32.xlu0 %v795, 19
      %v857 = vpop.permute.xlu0 %856
      %858 = vrot.lane.b32.xlu0 %v798, 19
      %v859 = vpop.permute.xlu0 %858
      %860 = vrot.lane.b32.xlu0 %v801, 19
      %v861 = vpop.permute.xlu0 %860
      %862 = vrot.lane.b32.xlu0 %v804, 19
      %v863 = vpop.permute.xlu0 %862
      %864 = vrot.lane.b32.xlu0 %v807, 19
      %v865 = vpop.permute.xlu0 %864
      %866 = vrot.lane.b32.xlu0 %v810, 19
      %v867 = vpop.permute.xlu0 %866
      %868 = vrot.lane.b32.xlu0 %v813, 19
      %v869 = vpop.permute.xlu0 %868
      %870 = vrot.lane.b32.xlu0 %v816, 19
      %v871 = vpop.permute.xlu0 %870
      %872 = vrot.lane.b32.xlu0 %v759, 19
      %v873 = vpop.permute.xlu0 %872
      %874 = vrot.lane.b32.xlu0 %v766, 19
      %v875 = vpop.permute.xlu0 %874
      %876 = vrot.lane.b32.xlu0 %v767, 19
      %v877 = vpop.permute.xlu0 %876
      %878 = vrot.lane.b32.xlu0 %v768, 19
      %v879 = vpop.permute.xlu0 %878
      %vm880 = vcmask 154624
      %v881 = vsel %vm880, %v841, %v843
      %v882 = vsel %vm880, %v843, %v845
      %v883 = vsel %vm880, %v845, %v847
      %v884 = vsel %vm880, %v849, %v851
      %v885 = vsel %vm880, %v851, %v853
      %v886 = vsel %vm880, %v853, %v855
      %v887 = vsel %vm880, %v857, %v859
      %v888 = vsel %vm880, %v859, %v861
      %v889 = vsel %vm880, %v861, %v863
      %v890 = vsel %vm880, %v865, %v867
      %v891 = vsel %vm880, %v867, %v869
      %v892 = vsel %vm880, %v869, %v871
      %v893 = vsel %vm880, %v873, %v875
      %v894 = vsel %vm880, %v875, %v877
      %v895 = vsel %vm880, %v877, %v879
      %vm908 = vcmask 588800
      %v910 = vsel %vm908, %v817, 0
      %v913 = vsel %vm478, %v893, 0
      %v916 = vsel %vm478, %v894, 0
      %v919 = vsel %vm478, %v895, 0
      %921 = vmatprep.subr.bf16.mxu0 %v882
      %922 = vmatpush1.bf16.msra.mxu0 %v881
      %923 = vmatprep.subr.bf16.mxu0 %v885
      %924 = vmatpush1.bf16.msra.mxu0 %v884
      %925 = vmatprep.subr.bf16.mxu0 %v888
      %926 = vmatpush1.bf16.msra.mxu0 %v887
      %927 = vmatprep.subr.bf16.mxu0 %v891
      %928 = vmatpush1.bf16.msra.mxu0 %v890
      %929 = vmatprep.subr.bf16.mxu0 %v916
      %930 = vmatpush1.bf16.msra.mxu0 %v913
      %931 = vmatprep.subr.bf16.mxu0 0
      %932 = vmatpush1.bf16.msra.mxu0 0
      %933 = vmatprep.subr.bf16.mxu0 0
      %934 = vmatpush1.bf16.msra.mxu0 0
      %935 = vmatprep.subr.bf16.mxu0 0
      %936 = vmatpush1.bf16.msra.mxu0 0
      %937 = vmatprep.subr.bf16.mxu0 0
      %938 = vmatpush1.bf16.msra.mxu0 0
      %939 = vmatprep.subr.bf16.mxu0 0
      %940 = vmatpush1.bf16.msra.mxu0 0
      %941 = vmatprep.subr.bf16.mxu0 0
      %942 = vmatpush1.bf16.msra.mxu0 0
      %943 = vmatprep.subr.bf16.mxu0 0
      %944 = vmatpush1.bf16.msra.mxu0 0
      %945 = vmatprep.subr.bf16.mxu0 0
      %946 = vmatpush1.bf16.msra.mxu0 0
      %947 = vmatprep.subr.bf16.mxu0 0
      %948 = vmatpush1.bf16.msra.mxu0 0
      %949 = vmatprep.subr.bf16.mxu0 0
      %950 = vmatpush1.bf16.msra.mxu0 0
      %951 = vmatprep.subr.bf16.mxu0 0
      %952 = vmatpush1.bf16.msra.mxu0 0
      %953 = vmatprep.mubr.bf16.mxu0 0
      %954 = vmatmul.mubr.bf16.gmra.mrb[0].mxu0 %v910
      %v955 = vpop.f32.mrb[0].mxu0
      %v956 = vadd.f32 %v822, %v955
      %v957 = vpop.f32.mrb[0].mxu0
      %v958 = vadd.f32 %v822, %v957
      %v959 = vpop.f32.mrb[0].mxu0
      %v960 = vpop.f32.mrb[0].mxu0
      %961 = vdwg.mxu0
      %962 = vmatprep.subr.bf16.mxu0 0
      %963 = vmatpush1.bf16.msra.mxu0 %v883
      %964 = vmatprep.subr.bf16.mxu0 0
      %965 = vmatpush1.bf16.msra.mxu0 %v886
      %966 = vmatprep.subr.bf16.mxu0 0
      %967 = vmatpush1.bf16.msra.mxu0 %v889
      %968 = vmatprep.subr.bf16.mxu0 0
      %969 = vmatpush1.bf16.msra.mxu0 %v892
      %970 = vmatprep.subr.bf16.mxu0 0
      %971 = vmatpush1.bf16.msra.mxu0 %v919
      %972 = vmatprep.subr.bf16.mxu0 0
      %973 = vmatpush1.bf16.msra.mxu0 0
      %974 = vmatprep.subr.bf16.mxu0 0
      %975 = vmatpush1.bf16.msra.mxu0 0
      %976 = vmatprep.subr.bf16.mxu0 0
      %977 = vmatpush1.bf16.msra.mxu0 0
      %978 = vmatprep.subr.bf16.mxu0 0
      %979 = vmatpush1.bf16.msra.mxu0 0
      %980 = vmatprep.subr.bf16.mxu0 0
      %981 = vmatpush1.bf16.msra.mxu0 0
      %982 = vmatprep.subr.bf16.mxu0 0
      %983 = vmatpush1.bf16.msra.mxu0 0
      %984 = vmatprep.subr.bf16.mxu0 0
      %985 = vmatpush1.bf16.msra.mxu0 0
      %986 = vmatprep.subr.bf16.mxu0 0
      %987 = vmatpush1.bf16.msra.mxu0 0
      %988 = vmatprep.subr.bf16.mxu0 0
      %989 = vmatpush1.bf16.msra.mxu0 0
      %990 = vmatprep.subr.bf16.mxu0 0
      %991 = vmatpush1.bf16.msra.mxu0 0
      %992 = vmatprep.subr.bf16.mxu0 0
      %993 = vmatpush1.bf16.msra.mxu0 0
      %994 = vmatprep.mubr.bf16.mxu0 0
      %995 = vmatmul.mubr.bf16.gmra.mrb[0].mxu0 %v910
      %v996 = vpop.f32.mrb[0].mxu0
      %v997 = vadd.f32 %v822, %v996
      %v998 = vpop.f32.mrb[0].mxu0
      %v999 = vpop.f32.mrb[0].mxu0
      %v1000 = vpop.f32.mrb[0].mxu0
      %1001 = vdwg.mxu0
      %v1002 = vmax.f32 %v956, 0.0
      %v1003 = vmax.f32 %v958, 0.0
      %v1004 = vmax.f32 %v997, 0.0
      %1005 = vst [vmem:[#allocation3] sm:$0xff] 0
      %1006 = vst [vmem:[#allocation3 + $0x8] sm:$0xff] 0
      %1007 = vst [vmem:[#allocation3 + $0x10] sm:$0xf] 0
      %v1008 = vsel %vm629, %v1002, 0.0
      %v1009 = vsel %vm630, %v1003, 0.0
      %v1010 = vsel %vm631, %v1004, 0.0
      %v1011 = vpack.c.bf16 %v1008, %v1008
      %v1012 = vpack.c.bf16 %v1009, %v1009
      %v1013 = vpack.c.bf16 %v1010, %v1010
      %v1017 = vunpack.c.l.b16 %v1011
      %v1018 = vunpack.c.l.b16 %v1012
      %v1019 = vunpack.c.l.b16 %v1013
      %v1020 = vpack.c.b16 %v1018, %v1017
      %v1021 = vpack.c.b16 %v1019, %v1019
      %1024 = vst [vmem:[#allocation3 + $0x4] sm:$0xff] %v1020
      %1025 = vst [vmem:[#allocation3 + $0xc] sm:$0xf] %v1021
      %v1026 = vld [vmem:[#allocation3 + $0x4] sm:$0xff]
      %v1027 = vld [vmem:[#allocation3 + $0xc] sm:$0xf]
      %v1028 = vld [vmem:[#allocation3 + $0x4] sm:$0xff]
      %v1029 = vld [vmem:[#allocation3 + $0xc] sm:$0xff]
      %v1032 = vunpack.c.l.b16 %v1026
      %v1033 = vunpack.c.h.b16 %v1026
      %v1034 = vunpack.c.l.b16 %v1027
      %v1035 = vpack.c.b16 %v1032, %v1032
      %v1036 = vpack.c.b16 %v1033, %v1033
      %v1037 = vpack.c.b16 %v1034, %v1034
      %v1040 = vunpack.c.l.b16 %v1028
      %v1041 = vunpack.c.h.b16 %v1028
      %v1042 = vunpack.c.l.b16 %v1029
      %v1043 = vunpack.c.h.b16 %v1029
      %v1044 = vpack.c.b16 %v1040, %v1040
      %v1045 = vpack.c.b16 %v1041, %v1041
      %v1046 = vpack.c.b16 %v1042, %v1042
      %v1047 = vpack.c.b16 %v1043, %v1043
      %1048 = vrot.lane.b32.xlu0 %v1044, 127
      %v1049 = vpop.permute.xlu0 %1048
      %1050 = vrot.lane.b32.xlu0 %v1045, 127
      %v1051 = vpop.permute.xlu0 %1050
      %1052 = vrot.lane.b32.xlu0 %v1046, 127
      %v1053 = vpop.permute.xlu0 %1052
      %1054 = vrot.lane.b32.xlu0 %v1047, 127
      %v1055 = vpop.permute.xlu0 %1054
      %v1056 = vsel %vm376, %v1049, %v1051
      %v1057 = vsel %vm376, %v1051, %v1053
      %v1058 = vsel %vm376, %v1053, %v1055
      %1059 = vrot.lane.b32.xlu0 %v1044, 110
      %v1060 = vpop.permute.xlu0 %1059
      %1061 = vrot.lane.b32.xlu0 %v1045, 110
      %v1062 = vpop.permute.xlu0 %1061
      %1063 = vrot.lane.b32.xlu0 %v1046, 110
      %v1064 = vpop.permute.xlu0 %1063
      %1065 = vrot.lane.b32.xlu0 %v1047, 110
      %v1066 = vpop.permute.xlu0 %1065
      %v1067 = vsel %vm403, %v1060, %v1062
      %v1068 = vsel %vm403, %v1062, %v1064
      %v1069 = vsel %vm403, %v1064, %v1066
      %1070 = vrot.lane.b32.xlu0 %v1044, 109
      %v1071 = vpop.permute.xlu0 %1070
      %1072 = vrot.lane.b32.xlu0 %v1045, 109
      %v1073 = vpop.permute.xlu0 %1072
      %1074 = vrot.lane.b32.xlu0 %v1046, 109
      %v1075 = vpop.permute.xlu0 %1074
      %1076 = vrot.lane.b32.xlu0 %v1047, 109
      %v1077 = vpop.permute.xlu0 %1076
      %v1078 = vsel %vm416, %v1071, %v1073
      %v1079 = vsel %vm416, %v1073, %v1075
      %v1080 = vsel %vm416, %v1075, %v1077
      %v1083 = vsel %vm478, %v1035, %v1056
      %v1087 = vsel %vm478, %v1036, %v1057
      %v1091 = vsel %vm478, %v1037, %v1058
      %v1095 = vsel %vm478, %v1067, %v1078
      %v1099 = vsel %vm478, %v1068, %v1079
      %v1103 = vsel %vm478, %v1069, %v1080
      %v1105 = vld [vmem:[%s5] sm:$0xf]
      %v1106 = vld [vmem:[%s5 + $0x4] sm:$0xf]
      %v1107 = vld [vmem:[%s6] sm:$0xff]
      %v1108 = vld [vmem:[%s6 + $0x8] sm:$0xff]
      %1110 = vset.pattern.permute.xlu0 0
      %1111 = vperm.xlu0 %1110, %v1107
      %v1112 = vpop.permute.xlu0 %1111
      %1115 = vset.pattern.permute.xlu0 0
      %1116 = vperm.xlu0 %1115, %v1108
      %v1117 = vpop.permute.xlu0 %1116
      %v1121 = vunpack.c.l.b16 %v1105
      %v1122 = vunpack.c.l.b16 %v1106
      %v1123 = vpack.c.b16 %v1122, %v1121
      %vm1124 = vcmask 261120
      %v1126 = vsel %vm1124, %v1123, 0
      %1128 = vmatprep.subr.bf16.mxu0 %v1087
      %1129 = vmatpush1.bf16.msra.mxu0 %v1083
      %1130 = vmatprep.subr.bf16.mxu0 %v1099
      %1131 = vmatpush1.bf16.msra.mxu0 %v1095
      %1132 = vmatprep.subr.bf16.mxu0 0
      %1133 = vmatpush1.bf16.msra.mxu0 0
      %1134 = vmatprep.subr.bf16.mxu0 0
      %1135 = vmatpush1.bf16.msra.mxu0 0
      %1136 = vmatprep.subr.bf16.mxu0 0
      %1137 = vmatpush1.bf16.msra.mxu0 0
      %1138 = vmatprep.subr.bf16.mxu0 0
      %1139 = vmatpush1.bf16.msra.mxu0 0
      %1140 = vmatprep.subr.bf16.mxu0 0
      %1141 = vmatpush1.bf16.msra.mxu0 0
      %1142 = vmatprep.subr.bf16.mxu0 0
      %1143 = vmatpush1.bf16.msra.mxu0 0
      %1144 = vmatprep.subr.bf16.mxu0 0
      %1145 = vmatpush1.bf16.msra.mxu0 0
      %1146 = vmatprep.subr.bf16.mxu0 0
      %1147 = vmatpush1.bf16.msra.mxu0 0
      %1148 = vmatprep.subr.bf16.mxu0 0
      %1149 = vmatpush1.bf16.msra.mxu0 0
      %1150 = vmatprep.subr.bf16.mxu0 0
      %1151 = vmatpush1.bf16.msra.mxu0 0
      %1152 = vmatprep.subr.bf16.mxu0 0
      %1153 = vmatpush1.bf16.msra.mxu0 0
      %1154 = vmatprep.subr.bf16.mxu0 0
      %1155 = vmatpush1.bf16.msra.mxu0 0
      %1156 = vmatprep.subr.bf16.mxu0 0
      %1157 = vmatpush1.bf16.msra.mxu0 0
      %1158 = vmatprep.subr.bf16.mxu0 0
      %1159 = vmatpush1.bf16.msra.mxu0 0
      %1160 = vmatprep.mubr.bf16.mxu0 0
      %1161 = vmatmul.mubr.bf16.gmra.mrb[0].mxu0 %v1126
      %v1162 = vpop.f32.mrb[0].mxu0
      %v1163 = vadd.f32 %v1112, %v1162
      %v1164 = vpop.f32.mrb[0].mxu0
      %v1165 = vadd.f32 %v1112, %v1164
      %v1166 = vpop.f32.mrb[0].mxu0
      %v1167 = vadd.f32 %v1117, %v1166
      %v1168 = vpop.f32.mrb[0].mxu0
      %v1169 = vadd.f32 %v1117, %v1168
      %1170 = vdwg.mxu0
      %1171 = vmatprep.subr.bf16.mxu0 0
      %1172 = vmatpush1.bf16.msra.mxu0 %v1091
      %1173 = vmatprep.subr.bf16.mxu0 0
      %1174 = vmatpush1.bf16.msra.mxu0 %v1103
      %1175 = vmatprep.subr.bf16.mxu0 0
      %1176 = vmatpush1.bf16.msra.mxu0 0
      %1177 = vmatprep.subr.bf16.mxu0 0
      %1178 = vmatpush1.bf16.msra.mxu0 0
      %1179 = vmatprep.subr.bf16.mxu0 0
      %1180 = vmatpush1.bf16.msra.mxu0 0
      %1181 = vmatprep.subr.bf16.mxu0 0
      %1182 = vmatpush1.bf16.msra.mxu0 0
      %1183 = vmatprep.subr.bf16.mxu0 0
      %1184 = vmatpush1.bf16.msra.mxu0 0
      %1185 = vmatprep.subr.bf16.mxu0 0
      %1186 = vmatpush1.bf16.msra.mxu0 0
      %1187 = vmatprep.subr.bf16.mxu0 0
      %1188 = vmatpush1.bf16.msra.mxu0 0
      %1189 = vmatprep.subr.bf16.mxu0 0
      %1190 = vmatpush1.bf16.msra.mxu0 0
      %1191 = vmatprep.subr.bf16.mxu0 0
      %1192 = vmatpush1.bf16.msra.mxu0 0
      %1193 = vmatprep.subr.bf16.mxu0 0
      %1194 = vmatpush1.bf16.msra.mxu0 0
      %1195 = vmatprep.subr.bf16.mxu0 0
      %1196 = vmatpush1.bf16.msra.mxu0 0
      %1197 = vmatprep.subr.bf16.mxu0 0
      %1198 = vmatpush1.bf16.msra.mxu0 0
      %1199 = vmatprep.subr.bf16.mxu0 0
      %1200 = vmatpush1.bf16.msra.mxu0 0
      %1201 = vmatprep.subr.bf16.mxu0 0
      %1202 = vmatpush1.bf16.msra.mxu0 0
      %1203 = vmatprep.mubr.bf16.mxu0 0
      %1204 = vmatmul.mubr.bf16.gmra.mrb[0].mxu0 %v1126
      %v1205 = vpop.f32.mrb[0].mxu0
      %v1206 = vadd.f32 %v1112, %v1205
      %v1207 = vpop.f32.mrb[0].mxu0
      %v1208 = vpop.f32.mrb[0].mxu0
      %v1209 = vadd.f32 %v1117, %v1208
      %v1210 = vpop.f32.mrb[0].mxu0
      %1211 = vdwg.mxu0
      %v1212 = vmax.f32 %v1163, 0.0
      %v1213 = vmax.f32 %v1165, 0.0
      %v1214 = vmax.f32 %v1206, 0.0
      %v1215 = vmax.f32 %v1167, 0.0
      %v1216 = vmax.f32 %v1169, 0.0
      %v1217 = vmax.f32 %v1209, 0.0
      %v1218 = vpack.c.bf16 %v1215, %v1212
      %v1219 = vpack.c.bf16 %v1216, %v1213
      %v1220 = vpack.c.bf16 %v1217, %v1214
      %v1224 = vunpack.c.l.b16 %v1218
      %v1225 = vunpack.c.l.b16 %v1219
      %v1226 = vunpack.c.l.b16 %v1220
      %v1227 = vunpack.c.h.b16 %v1218
      %v1228 = vunpack.c.h.b16 %v1219
      %v1229 = vunpack.c.h.b16 %v1220
      %v1230 = vpack.c.b16 %v1225, %v1224
      %v1231 = vpack.c.b16 %v1226, %v1226
      %v1232 = vpack.c.b16 %v1228, %v1227
      %v1233 = vpack.c.b16 %v1229, %v1229
      %1238 = vst [vmem:[%s278] sm:$0xff] %v1230
      %1239 = vst [vmem:[%s278 + $0x8] sm:$0xf] %v1231
      %1240 = vst [vmem:[%s278 + $0xc] sm:$0xff] %v1232
      %1241 = vst [vmem:[%s278 + $0x14] sm:$0xf] %v1233
      %p1242 = scmp.lt.s32.totalorder %s18, 1
      %s1243 = scalar_select %p1242, %s18, 1
      %s1244 = smul.addr %s1243, 6
      %s1245 = smul.addr %s1244, 4
      %s1246 = scalar_lea.vmem %s7, %s1245
      // Predicated region
      $region49: #{a_call__.1} parent=47 // pred_check
        %p1247 = pneg %p188
      $region50: #{a_call__.1} parent=47 // pred_check_branch
        %1249 = sbr.rel (%p1247) target = $region52
      $region51: #{a_call__.1} parent=47 // pred_region
        _
      $region52: #{a_call__.1} parent=47 // pred_fallthru
        _
    $region48: #{a_call__.1} parent=5 // pred_fallthru
      _
    %p1250 = scmp.le.s32.totalorder 2, %s13
    // Predicated region
    $region53: #{a_call__.1} parent=5 // pred_check
      %p1251 = pneg %p1250
    $region54: #{a_call__.1} parent=5 // pred_check_branch
      %1253 = sbr.rel (%p1251) target = $region56
    $region55: #{a_call__.1} parent=5 // pred_region
      %s1254 = ssub.s32 %s13, 2
      // Predicated region
      $region57: #{a_call__.1} parent=55 // pred_check
        %p1255 = pneg %p194
      $region58: #{a_call__.1} parent=55 // pred_check_branch
        %1257 = sbr.rel (%p1255) target = $region60
      $region59: #{a_call__.1} parent=55 // pred_region
        %p1258 = scmp.lt.s32.totalorder %s19, 1
        %s1259 = scalar_select %p1258, %s19, 1
        %s1260 = smul.addr %s1259, 6
        %s1261 = smul.addr %s1260, 4
        %s1262 = scalar_lea.vmem %s7, %s1261
      $region60: #{a_call__.1} parent=55 // pred_fallthru
        _
    $region56: #{a_call__.1} parent=5 // pred_fallthru
      _
  $region6: #{a_call__.1} parent=0 // loop_footer
    %s17 = sadd.s32 1, %s13
  $region7: #{a_call__.1} parent=0 // loop_footer_branch
    %12 = sbr.rel target = $region3
  $region8: #{a_call__.1} parent=0 // loop_exit
    _

</llo_original>
